<compile_context>
chip_gen: v7x
topology: tpu7x:2x2x1
jax: 0.10.0
libtpu: 0.0.40
codegen_flags: <defaults>
</compile_context>

<pallas_src>
import functools

import jax
import jax.numpy as jnp
from jax.experimental import pallas as pl
from jax.experimental.pallas import tpu as pltpu


_DEFAULT_BLOCK_BUDGET = 8 * 1024 * 1024    # bytes of input per grid step (per buffer)
_VMEM_LIMIT_CAP = 48 * 1024 * 1024         # stay well under v7x's 64 MiB physical VMEM


def _choose_tiling(rows, s, itemsize, budget):
    """Pick (rows_t, ts, rows_pad): row-block height, lane-dense spatial tile,
    and the sublane-padded row count actually occupied in VMEM."""
    sub = max(1, 32 // max(1, itemsize))       # sublane packing: 8 f32, 16 bf16
    if rows >= 16:
        # Exactly two row blocks (each a multiple of 8) -> >=2 blocks on the
        # 'parallel' axis for v7x megacore; harmless on v5e/v6e.
        rows_t = 8 * ((rows + 15) // 16)
    else:
        rows_t = rows                          # full extent (ok for any value)
    rows_pad = ((rows_t + sub - 1) // sub) * sub
    if rows_pad * s * itemsize <= budget:
        ts = s                                 # whole rows fit in one block
    else:
        ts = (budget // (rows_pad * itemsize)) // 128 * 128
        ts = max(128, min(ts, s))
    return rows_t, ts, rows_pad


def _row_sum_kernel(x_ref, o_ref, *, rem):
    # x_ref: (rows_t, ts) input block.
    # o_ref: (rows_t, 1) f32 output block, resident across the spatial axis
    #        (same block index for every k) -> used directly as accumulator.
    k = pl.program_id(1)
    last = pl.num_programs(1) - 1

    @pl.when(k == 0)
    def _():
        o_ref[...] = jnp.zeros_like(o_ref)

    x = x_ref[...].astype(jnp.float32)         # accumulate in f32

    if rem == 0:
        o_ref[...] += jnp.sum(x, axis=-1, keepdims=True)
    else:
        # Steady state: dense row-sum only (no mask work).
        @pl.when(k != last)
        def _():
            o_ref[...] += jnp.sum(x, axis=-1, keepdims=True)

        # Ragged spatial tail: pay the iota/compare/select only on the final
        # step (padded lanes of the edge block hold unspecified data).
        @pl.when(k == last)
        def _():
            lane = jax.lax.broadcasted_iota(jnp.int32, x.shape, 1)
            o_ref[...] += jnp.sum(jnp.where(lane < rem, x, 0.0),
                                  axis=-1, keepdims=True)


def l_color(x, *, block_budget_bytes=_DEFAULT_BLOCK_BUDGET):
    """Pallas implementation of L_color.forward. x: (B, 3, H, W) -> (B, 1, 1, 1)."""
    b, c, h, w = x.shape
    assert c == 3, "L_color expects 3 channels (RGB)"
    s = h * w
    rows = b * 3
    itemsize = jnp.dtype(x.dtype).itemsize

    rows_t, ts, rows_pad = _choose_tiling(rows, s, itemsize, block_budget_bytes)
    nr = pl.cdiv(rows, rows_t)
    ns = pl.cdiv(s, ts)
    rem = s % ts

    x_rows = x.reshape(rows, s)                # free, contiguous reshape

    # Real VMEM footprint: double-buffered input block + tiny output block.
    in_block_bytes = rows_pad * ts * itemsize
    vmem_limit = int(min(_VMEM_LIMIT_CAP,
                         max(16 * 1024 * 1024,
                             2 * in_block_bytes + 2 * 1024 * 1024)))

    kernel = functools.partial(_row_sum_kernel, rem=rem)

    cost = pl.CostEstimate(
        flops=rows * s,                        # reduction adds
        transcendentals=0,                     # sqrt lives in the JAX epilogue
        bytes_accessed=rows * s * itemsize + rows * 4,
    )

    sums = pl.pallas_call(
        kernel,
        out_shape=jax.ShapeDtypeStruct((rows, 1), jnp.float32),
        grid_spec=pltpu.PrefetchScalarGridSpec(
            num_scalar_prefetch=0,
            grid=(nr, ns),                     # reduction (spatial) axis last
            in_specs=[pl.BlockSpec((rows_t, ts), lambda i, k: (i, k))],
            out_specs=pl.BlockSpec((rows_t, 1), lambda i, k: (i, 0)),
        ),
        compiler_params=pltpu.CompilerParams(
            dimension_semantics=("parallel", "arbitrary"),
            vmem_limit_bytes=vmem_limit,
        ),
        cost_estimate=cost,
    )(x_rows)

    # O(B) epilogue in plain JAX: per-channel means -> color-constancy loss.
    m = sums.reshape(b, 3) * (1.0 / float(s))
    mr, mg, mb = m[:, 0], m[:, 1], m[:, 2]
    drg = (mr - mg) ** 2
    drb = (mr - mb) ** 2
    dgb = (mb - mg) ** 2
    k = jnp.sqrt(drg ** 2 + drb ** 2 + dgb ** 2)
    return k.reshape(b, 1, 1, 1).astype(x.dtype)


def l_color_ref(x):
    """Pure-JAX reference mirroring the PyTorch forward."""
    mean_rgb = jnp.mean(x, axis=(2, 3), keepdims=True)          # (B,3,1,1)
    mr = mean_rgb[:, 0:1]
    mg = mean_rgb[:, 1:2]
    mb = mean_rgb[:, 2:3]
    drg = (mr - mg) ** 2
    drb = (mr - mb) ** 2
    dgb = (mb - mg) ** 2
    return jnp.sqrt(drg ** 2 + drb ** 2 + dgb ** 2)


if __name__ == "__main__":
    # Small deterministic input consistent with the module: B=2, C=3 (RGB), H=W=16.
    x = jax.random.uniform(jax.random.PRNGKey(0), (2, 3, 16, 16), dtype=jnp.float32)
    out = jax.block_until_ready(l_color(x))
    ref = jax.block_until_ready(l_color_ref(x))
    assert out.shape == (2, 1, 1, 1)
    assert jnp.allclose(out, ref, atol=1e-6, rtol=1e-5)

    # Spatially-tiled path with a ragged tail (mask only on the final step),
    # forced via a tiny block budget so the test input stays small.
    x2 = jax.random.uniform(jax.random.PRNGKey(1), (2, 3, 24, 40), dtype=jnp.float32)
    out2 = jax.block_until_ready(l_color(x2, block_budget_bytes=6144))
    ref2 = jax.block_until_ready(l_color_ref(x2))
    assert out2.shape == (2, 1, 1, 1)
    assert jnp.allclose(out2, ref2, atol=1e-6, rtol=1e-5)

    # Row-split path (B*3 >= 16 -> two parallel row blocks, ragged last block).
    x3 = jax.random.uniform(jax.random.PRNGKey(2), (8, 3, 16, 16), dtype=jnp.float32)
    out3 = jax.block_until_ready(l_color(x3))
    ref3 = jax.block_until_ready(l_color_ref(x3))
    assert out3.shape == (8, 1, 1, 1)
    assert jnp.allclose(out3, ref3, atol=1e-6, rtol=1e-5)

    print("KERNEL_OK")
</pallas_src>

<mosaic_0001>
module attributes {stable_mosaic.version = 11 : i64} {
  func.func @_row_sum_kernel(%arg0: i32, %arg1: i32, %arg2: memref<6x256xf32, #tpu.memory_space<vmem>>, %arg3: memref<6x1xf32, #tpu.memory_space<vmem>>) attributes {dimension_semantics = [#tpu.dimension_semantics<parallel>, #tpu.dimension_semantics<arbitrary>], iteration_bounds = array<i64: 1, 1>, scalar_prefetch = 0 : i64, scratch_operands = 0 : i64, tpu.core_type = #tpu.core_type<tc>, window_params = [{transform_indices = @transform_0, window_bounds = array<i64: 6, 256>}, {transform_indices = @transform_1, window_bounds = array<i64: 6, 1>}]} {
    %c0_i32 = arith.constant 0 : i32
    %0 = arith.cmpi eq, %arg1, %c0_i32 : i32
    %1 = arith.extui %0 : i1 to i32
    %c0_i32_0 = arith.constant 0 : i32
    %2 = arith.cmpi ne, %1, %c0_i32_0 : i32
    scf.if %2 {
      %cst_6 = arith.constant 0.000000e+00 : f32
      %9 = vector.broadcast %cst_6 : f32 to vector<6x1xf32>
      %c0_7 = arith.constant 0 : index
      %c0_8 = arith.constant 0 : index
      %10 = vector.load %arg3[%c0_7, %c0_8] : memref<6x1xf32, #tpu.memory_space<vmem>>, vector<6x1xf32>
      tpu.vector_store %arg3[%c0_7, %c0_8], %9 {strides = array<i32>} : memref<6x1xf32, #tpu.memory_space<vmem>>, vector<6x1xf32>,
    } else {
    }
    %c0 = arith.constant 0 : index
    %c0_1 = arith.constant 0 : index
    %3 = vector.load %arg2[%c0, %c0_1] : memref<6x256xf32, #tpu.memory_space<vmem>>, vector<6x256xf32>
    %c0_2 = arith.constant 0 : index
    %c0_3 = arith.constant 0 : index
    %4 = vector.load %arg3[%c0_2, %c0_3] : memref<6x1xf32, #tpu.memory_space<vmem>>, vector<6x1xf32>
    %cst = arith.constant dense<0.000000e+00> : vector<6xf32>
    %5 = vector.multi_reduction <add>, %3, %cst [1] : vector<6x256xf32> to vector<6xf32>
    %6 = vector.shape_cast %5 : vector<6xf32> to vector<6x1xf32>
    %7 = arith.addf %4, %6 : vector<6x1xf32>
    %c0_4 = arith.constant 0 : index
    %c0_5 = arith.constant 0 : index
    %8 = vector.load %arg3[%c0_4, %c0_5] : memref<6x1xf32, #tpu.memory_space<vmem>>, vector<6x1xf32>
    tpu.vector_store %arg3[%c0_4, %c0_5], %7 {strides = array<i32>} : memref<6x1xf32, #tpu.memory_space<vmem>>, vector<6x1xf32>,
    return
  }
  func.func @transform_0(%arg0: i32, %arg1: i32) -> (i32, i32) {
    %c0_i32 = arith.constant 0 : i32
    return %arg0, %arg1 : i32, i32
  }
  func.func @transform_1(%arg0: i32, %arg1: i32) -> (i32, i32) {
    %c0_i32 = arith.constant 0 : i32
    %c0_i32_0 = arith.constant 0 : i32
    return %arg0, %c0_i32 : i32, i32
  }
}

</mosaic_0001>

<llo_original>
// kernel: tpu_custom_call.1
$region0: #{tpu_custom_call.1}
  #allocation0 [shape = 'u32[]', space=smem, size = 0x4, offset = 0x4, fixed_abs, tag = 'smem constant byte address 0x4 - core index']
  #allocation1 [shape = 'u32[144,128]{1,0:T(1,128)}', space=vmem, size = 0x12000, scoped, tag = 'internal scratch']
  %s0 = inlined_call_operand.hbm [shape: f32[6,256], index: 0, kind: input, shape index: {}]
  %s1 = inlined_call_operand.vmem [shape: f32[6,1], index: 1, kind: output, shape index: {}]
  %s2 = sld [smem:[#allocation0]]
  $region22: #{tpu_custom_call.1} parent=0
    _
  %s4 = ssub.s32 1, %s2
  %s5 = scalar_select 0, %s4, %s2
  $region1: #{tpu_custom_call.1} parent=0
    #allocation2 [shape = 'u8[8192]{0}', space=vmem, size = 0x2000, scoped, tag = 'input window, operand 0, single buffered']
    #allocation3 [shape = 's32[1]{0}', space=sflag, size = 0x4, scoped, tag = 'scoped memory for tpu_custom_call.1']
    %6 = vsyncpa [#allocation3], 0
    // Predicated region
    $region2: #{tpu_custom_call.1} parent=1 // pred_check
      _
    $region3: #{tpu_custom_call.1} parent=1 // pred_check_branch
      %8 = sbr.rel (0) target = $region5
    $region4: #{tpu_custom_call.1} parent=1 // pred_region
      %s10 = ssub.s32 256, 256
      %11 = vsyncadd [#allocation3], %s10
      %s13 = sshll.u32 [#allocation2], 4
      %s14 = int_to_ptr.vmem [resolvable:$true] %s13
      %16 = dma.hbm_to_vmem [thread:$0]  %s0, 256, %s14, [#allocation3]
    $region5: #{tpu_custom_call.1} parent=1 // pred_fallthru
      _
    // Predicated region
    $region6: #{tpu_custom_call.1} parent=1 // pred_check
      _
    $region7: #{tpu_custom_call.1} parent=1 // pred_check_branch
      %18 = sbr.rel (0) target = $region9
    $region8: #{tpu_custom_call.1} parent=1 // pred_region
      %19 = dma.done [#allocation3], 256
    $region9: #{tpu_custom_call.1} parent=1 // pred_fallthru
      _
    %p20 = scmp.eq.s32.totalorder 0, 0
    // Predicated region
    $region10: #{tpu_custom_call.1} parent=1 // pred_check
      %p21 = pneg %p20
    $region11: #{tpu_custom_call.1} parent=1 // pred_check_branch
      %23 = sbr.rel (%p21) target = $region13
    $region12: #{tpu_custom_call.1} parent=1 // pred_region
      %vm24 = vcmask 5120
      %25 = vst.msk [vmem:[%s1] sm:$0x3f] %vm24, 0.0
    $region13: #{tpu_custom_call.1} parent=1 // pred_fallthru
      _
    %v26 = vld [vmem:[#allocation2] sm:$0x3f]
    %v27 = vld [vmem:[#allocation2 + $0x8] sm:$0x3f]
    %v28 = vld [vmem:[%s1] sm:$0x3f]
    %vm29 = vcmask 1045504
    %v30 = vsel %vm29, %v26, 0.0
    %v31 = vsel %vm29, %v27, 0.0
    %v32 = vadd.f32 %v30, %v31
    %33 = vadd.xlane.f32.xlu0 %v32
    %v34 = vpop.xlane.xlu0 %33
    %v35 = vadd.f32 %v28, %v34
    %vm36 = vcmask 5120
    %37 = vst.msk [vmem:[%s1] sm:$0x3f] %vm36, %v35
    // Predicated region
    $region14: #{tpu_custom_call.1} parent=1 // pred_check
      _
    $region15: #{tpu_custom_call.1} parent=1 // pred_check_branch
      %39 = sbr.rel (0) target = $region17
    $region16: #{tpu_custom_call.1} parent=1 // pred_region
      _
    $region17: #{tpu_custom_call.1} parent=1 // pred_fallthru
      _
    // Predicated region
    $region18: #{tpu_custom_call.1} parent=1 // pred_check
      _
    $region19: #{tpu_custom_call.1} parent=1 // pred_check_branch
      %41 = sbr.rel (0) target = $region21
    $region20: #{tpu_custom_call.1} parent=1 // pred_region
      _
    $region21: #{tpu_custom_call.1} parent=1 // pred_fallthru
      _
    %42 = vsyncpa [#allocation3], 1

</llo_original>
